<compile_context>
chip_gen: v7x
topology: tpu7x:2x2x1
jax: 0.10.0
libtpu: 0.0.40
codegen_flags: <defaults>
</compile_context>

<pallas_src>
import functools

import jax
import jax.numpy as jnp
from jax.experimental import pallas as pl
from jax.experimental.pallas import tpu as pltpu


# Contract the last dim of x[M,K] with the last dim of W[N,K]  (i.e. x @ W.T).
_TRANS_RHS_DNUMS = (((1,), (1,)), ((), ()))


# ----------------------------------------------------------------------------
# Kernel A: gridless fast path — everything resident in VMEM, single block.
# ----------------------------------------------------------------------------
def _small_kernel(x_ref, w_ref, b_ref, xr_ref, wr_ref, o_ref, *, compute_dtype):
    acc = jax.lax.dot_general(
        x_ref[...].astype(compute_dtype),
        w_ref[...].astype(compute_dtype),
        _TRANS_RHS_DNUMS,
        preferred_element_type=jnp.float32,
    )
    # Rank-r merge correction (contraction dim = r is tiny; keep f32 operands).
    acc += jnp.dot(xr_ref[...], wr_ref[...], preferred_element_type=jnp.float32)
    o_ref[...] = (acc + b_ref[...]).astype(o_ref.dtype)


# ----------------------------------------------------------------------------
# Kernel B: tiled path
#   y[M,N] = x[M,K] @ W[N,K]^T + xr[M,r] @ wr[r,N] + bias[1,N]
# ----------------------------------------------------------------------------
def _tiled_kernel(x_ref, w_ref, b_ref, xr_ref, wr_ref, o_ref, acc_ref, *, compute_dtype):
    k = pl.program_id(2)

    @pl.when(k == 0)
    def _():
        acc_ref[...] = jnp.zeros_like(acc_ref)

    acc_ref[...] += jax.lax.dot_general(
        x_ref[...].astype(compute_dtype),
        w_ref[...].astype(compute_dtype),
        _TRANS_RHS_DNUMS,
        preferred_element_type=jnp.float32,
    )

    @pl.when(k == pl.num_programs(2) - 1)
    def _():
        corr = jnp.dot(xr_ref[...], wr_ref[...], preferred_element_type=jnp.float32)
        o_ref[...] = (acc_ref[...] + corr + b_ref[...]).astype(o_ref.dtype)


# ----------------------------------------------------------------------------
# Tiling helpers
# ----------------------------------------------------------------------------
def _round_up(v, m):
    return (v + m - 1) // m * m


def _pick_tile(dim, preferred, granule):
    """Largest tile <= preferred that exactly divides `dim`.

    A tile is legal for Mosaic if it is a multiple of `granule` (8 for the
    sublane dim, 128 for the lane dim) or equals the full dim."""
    if dim <= preferred:
        return dim                       # full-extent block is always legal
    best = 0
    for cand in range(granule, preferred + 1, granule):
        if dim % cand == 0:
            best = cand
    if best == 0:
        # TODO(synk): add in-kernel edge masking for dims with no aligned divisor.
        raise ValueError(f"no aligned tile divides dim={dim} (granule={granule})")
    return best


# ----------------------------------------------------------------------------
# Pallas dispatch:  y = x2d @ W.T + xr_rot @ w_rows + bias
# ----------------------------------------------------------------------------
def soft_linear_matmul(x2d, weight, bias, xr_rot, w_rows, *,
                       compute_dtype=jnp.bfloat16,
                       tm=256, tn=512, tk=512,
                       small_bytes=4 << 20):
    M, K = x2d.shape
    N, K2 = weight.shape
    assert K == K2, (K, K2)
    r = w_rows.shape[0]
    bias2d = bias.reshape(1, N)
    out_dtype = x2d.dtype

    itemsize = jnp.dtype(x2d.dtype).itemsize
    total_bytes = itemsize * (M * K + N * K + M * N)

    # ---- tiny-shape fast path: single block, no grid/pipeline overhead -------
    if total_bytes <= small_bytes:
        kern = functools.partial(_small_kernel, compute_dtype=compute_dtype)
        return pl.pallas_call(
            kern,
            out_shape=jax.ShapeDtypeStruct((M, N), out_dtype),
        )(x2d, weight, bias2d, xr_rot, w_rows)

    # ---- tiled path -----------------------------------------------------------
    # Pad M (activations only — cheap) so a multiple-of-8 tile divides it.
    Mp = _round_up(M, 8)
    if Mp != M:
        x2d = jnp.pad(x2d, ((0, Mp - M), (0, 0)))
        xr_rot = jnp.pad(xr_rot, ((0, Mp - M), (0, 0)))

    tm = _pick_tile(Mp, tm, 8)
    tn = _pick_tile(N, tn, 128)
    tk = _pick_tile(K, tk, 128)
    # v7x shards "parallel" grid axes over 2 TensorCores: keep >= 2 blocks on a
    # parallel axis when the shapes allow it.
    if (Mp // tm) == 1 and (N // tn) == 1 and tn % 256 == 0:
        tn //= 2

    grid = (Mp // tm, N // tn, K // tk)
    kern = functools.partial(_tiled_kernel, compute_dtype=compute_dtype)

    y = pl.pallas_call(
        kern,
        out_shape=jax.ShapeDtypeStruct((Mp, N), out_dtype),
        grid_spec=pltpu.PrefetchScalarGridSpec(
            num_scalar_prefetch=0,
            grid=grid,
            in_specs=[
                pl.BlockSpec((tm, tk), lambda i, j, k: (i, k)),   # x tile
                pl.BlockSpec((tn, tk), lambda i, j, k: (j, k)),   # W tile, native [out,in]
                pl.BlockSpec((1, tn), lambda i, j, k: (0, j)),    # bias tile
                pl.BlockSpec((tm, r), lambda i, j, k: (i, 0)),    # x[:, idx] @ (R - I)
                pl.BlockSpec((r, tn), lambda i, j, k: (0, j)),    # W.T[idx, :]
            ],
            out_specs=pl.BlockSpec((tm, tn), lambda i, j, k: (i, j)),
            scratch_shapes=[pltpu.VMEM((tm, tn), jnp.float32)],
        ),
        compiler_params=pltpu.CompilerParams(
            dimension_semantics=("parallel", "parallel", "arbitrary"),
            vmem_limit_bytes=48 * 1024 * 1024,   # fits v7x's 64 MiB physical VMEM
        ),
    )(x2d, weight, bias2d, xr_rot, w_rows)

    return y[:M] if Mp != M else y


# ----------------------------------------------------------------------------
# SOFTLinear forward (glue + kernels)
# ----------------------------------------------------------------------------
def _soft_linear_forward(x, weight, bias, soft_R, soft_R_indices, *,
                         compute_dtype=jnp.bfloat16):
    """x: [..., in], weight: [out, in] (PyTorch order), bias: [out] or None,
    soft_R: [r, r], soft_R_indices: [r] (distinct indices into `in`)."""
    out_features, in_features = weight.shape
    r = soft_R.shape[0]
    lead = x.shape[:-1]
    x2d = x.reshape(-1, in_features)

    # merge_and_reinit() folded algebraically into the matmul (the merged weight
    # is persistent module state; a training loop would hoist the merge, here we
    # keep the "merge inside forward" semantics without rewriting W in HBM):
    #   y = x @ W.T + (x[:, idx] @ (soft_R - I)) @ W.T[idx, :] + bias
    w_rows = weight[:, soft_R_indices].T.astype(x2d.dtype)             # [r, out]
    delta_R = soft_R.astype(x2d.dtype) - jnp.eye(r, dtype=x2d.dtype)   # [r, r]
    xr_rot = x2d[:, soft_R_indices] @ delta_R                          # [M, r]

    if bias is None:
        bias = jnp.zeros((out_features,), dtype=x2d.dtype)

    y2d = soft_linear_matmul(x2d, weight, bias.astype(x2d.dtype), xr_rot, w_rows,
                             compute_dtype=compute_dtype)
    return y2d.reshape(*lead, out_features)


soft_linear_forward = jax.jit(_soft_linear_forward, static_argnames=("compute_dtype",))


# ----------------------------------------------------------------------------
# Self-test
# ----------------------------------------------------------------------------
if __name__ == "__main__":
    def reference(x, weight, bias, soft_R, soft_R_indices):
        in_f, out_f = weight.shape[1], weight.shape[0]
        w_t = weight.T
        rows = w_t[soft_R_indices, :]
        w_t = w_t.at[soft_R_indices, :].set(
            jnp.dot(soft_R, rows, precision=jax.lax.Precision.HIGHEST))
        y = jnp.dot(x.reshape(-1, in_f), w_t,
                    precision=jax.lax.Precision.HIGHEST) + bias
        return y.reshape(*x.shape[:-1], out_f)

    key = jax.random.PRNGKey(0)
    k1w, k1b, k1r, k1i, k1x, k2w, k2b, k2r, k2i, k2x = jax.random.split(key, 10)

    # --- case 1: module-scale shapes -> gridless fast path ---------------------
    in_f, out_f, r = 256, 128, 8
    weight = jax.random.normal(k1w, (out_f, in_f), jnp.float32) * 0.02
    bias = jax.random.normal(k1b, (out_f,), jnp.float32) * 0.01
    soft_R = jnp.eye(r, dtype=jnp.float32) + 0.1 * jax.random.normal(k1r, (r, r), jnp.float32)
    soft_R_indices = jax.random.permutation(k1i, in_f)[:r].astype(jnp.int32)
    x = jax.random.normal(k1x, (2, 8, in_f), jnp.float32)

    y_ref = reference(x, weight, bias, soft_R, soft_R_indices)
    y_f32 = jax.block_until_ready(
        soft_linear_forward(x, weight, bias, soft_R, soft_R_indices,
                            compute_dtype=jnp.float32))
    y_bf16 = jax.block_until_ready(
        soft_linear_forward(x, weight, bias, soft_R, soft_R_indices))
    assert y_f32.shape == (2, 8, out_f)
    assert jnp.allclose(y_f32, y_ref, rtol=2e-3, atol=2e-3)
    assert jnp.allclose(y_bf16, y_ref, rtol=2e-2, atol=2e-2)

    # --- case 2: moderate shapes -> tiled path (exercises k-accumulation) -----
    in_f2, out_f2 = 1024, 512
    weight2 = jax.random.normal(k2w, (out_f2, in_f2), jnp.float32) * 0.02
    bias2 = jax.random.normal(k2b, (out_f2,), jnp.float32) * 0.01
    soft_R2 = jnp.eye(r, dtype=jnp.float32) + 0.1 * jax.random.normal(k2r, (r, r), jnp.float32)
    soft_R_indices2 = jax.random.permutation(k2i, in_f2)[:r].astype(jnp.int32)
    x2 = jax.random.normal(k2x, (4, 128, in_f2), jnp.float32)

    y2_ref = reference(x2, weight2, bias2, soft_R2, soft_R_indices2)
    y2_f32 = jax.block_until_ready(
        soft_linear_forward(x2, weight2, bias2, soft_R2, soft_R_indices2,
                            compute_dtype=jnp.float32))
    y2_bf16 = jax.block_until_ready(
        soft_linear_forward(x2, weight2, bias2, soft_R2, soft_R_indices2))
    assert y2_f32.shape == (4, 128, out_f2)
    assert jnp.allclose(y2_f32, y2_ref, rtol=2e-3, atol=2e-3)
    assert jnp.allclose(y2_bf16, y2_ref, rtol=2e-2, atol=2e-2)

    print("KERNEL_OK")
</pallas_src>

<mosaic_0001>
module attributes {stable_mosaic.version = 11 : i64} {
  func.func @_small_kernel(%arg0: memref<16x256xf32, #tpu.memory_space<vmem>>, %arg1: memref<128x256xf32, #tpu.memory_space<vmem>>, %arg2: memref<1x128xf32, #tpu.memory_space<vmem>>, %arg3: memref<16x8xf32, #tpu.memory_space<vmem>>, %arg4: memref<8x128xf32, #tpu.memory_space<vmem>>, %arg5: memref<16x128xf32, #tpu.memory_space<vmem>>) attributes {dimension_semantics = [], scalar_prefetch = 0 : i64, scratch_operands = 0 : i64, tpu.core_type = #tpu.core_type<tc>} {
    %c0 = arith.constant 0 : index
    %c0_0 = arith.constant 0 : index
    %0 = vector.load %arg0[%c0, %c0_0] : memref<16x256xf32, #tpu.memory_space<vmem>>, vector<16x256xf32>
    %c0_1 = arith.constant 0 : index
    %c0_2 = arith.constant 0 : index
    %1 = vector.load %arg1[%c0_1, %c0_2] : memref<128x256xf32, #tpu.memory_space<vmem>>, vector<128x256xf32>
    %cst = arith.constant dense<0.000000e+00> : vector<16x128xf32>
    %2 = tpu.matmul %0, %1, %cst {dimension_numbers = #tpu.dot_dimension_numbers<[1], [1], [0], [0], [0, 0, 1, 0], [], []>} : vector<16x256xf32>, vector<128x256xf32>, vector<16x128xf32> -> vector<16x128xf32>
    %c0_3 = arith.constant 0 : index
    %c0_4 = arith.constant 0 : index
    %3 = vector.load %arg3[%c0_3, %c0_4] : memref<16x8xf32, #tpu.memory_space<vmem>>, vector<16x8xf32>
    %c0_5 = arith.constant 0 : index
    %c0_6 = arith.constant 0 : index
    %4 = vector.load %arg4[%c0_5, %c0_6] : memref<8x128xf32, #tpu.memory_space<vmem>>, vector<8x128xf32>
    %cst_7 = arith.constant dense<0.000000e+00> : vector<16x128xf32>
    %5 = tpu.matmul %3, %4, %cst_7 {dimension_numbers = #tpu.dot_dimension_numbers<[1], [0], [0], [1], [0, 0, 1, 1], [], []>} : vector<16x8xf32>, vector<8x128xf32>, vector<16x128xf32> -> vector<16x128xf32>
    %6 = arith.addf %2, %5 : vector<16x128xf32>
    %c0_8 = arith.constant 0 : index
    %c0_9 = arith.constant 0 : index
    %7 = vector.load %arg2[%c0_8, %c0_9] : memref<1x128xf32, #tpu.memory_space<vmem>>, vector<1x128xf32>
    %8 = vector.broadcast %7 : vector<1x128xf32> to vector<16x128xf32>
    %9 = arith.addf %6, %8 : vector<16x128xf32>
    %c0_10 = arith.constant 0 : index
    %c0_11 = arith.constant 0 : index
    %10 = vector.load %arg5[%c0_10, %c0_11] : memref<16x128xf32, #tpu.memory_space<vmem>>, vector<16x128xf32>
    tpu.vector_store %arg5[%c0_10, %c0_11], %9 {strides = array<i32>} : memref<16x128xf32, #tpu.memory_space<vmem>>, vector<16x128xf32>,
    return
  }
}

</mosaic_0001>

<llo_original>
// kernel: _soft_linear_forward.1
$region0: #{_soft_linear_forward.1}
  #allocation0 [shape = 'u32[]', space=smem, size = 0x4, offset = 0x4, fixed_abs, tag = 'smem constant byte address 0x4 - core index']
  #allocation1 [shape = 'u32[144,128]{1,0:T(1,128)}', space=vmem, size = 0x12000, scoped, tag = 'internal scratch']
  %s0 = inlined_call_operand.vmem [shape: f32[16,256], index: 0, kind: input, shape index: {}]
  %s1 = inlined_call_operand.vmem [shape: f32[128,256], index: 1, kind: input, shape index: {}]
  %s2 = inlined_call_operand.vmem [shape: f32[1,128], index: 2, kind: input, shape index: {}]
  %s3 = inlined_call_operand.vmem [shape: f32[16,8], index: 3, kind: input, shape index: {}]
  %s4 = inlined_call_operand.vmem [shape: f32[8,128], index: 4, kind: input, shape index: {}]
  %s5 = inlined_call_operand.hbm [shape: f32[16,128], index: 5, kind: output, shape index: {}]
  %s6 = sld [smem:[#allocation0]]
  $region30: #{_soft_linear_forward.1} parent=0
    _
  %s8 = ssub.s32 1, %s6
  %s9 = scalar_select 0, %s8, %s6
  $region1: #{_soft_linear_forward.1} parent=0
    #allocation2 [shape = 'u8[8192]{0}', space=vmem, size = 0x2000, scoped, tag = 'output window, operand 0, single buffered']
    #allocation3 [shape = 's32[1]{0}', space=sflag, size = 0x4, scoped, tag = 'scoped memory for _soft_linear_forward.1']
    %10 = vsyncpa [#allocation3], 0
    // Predicated region
    $region2: #{_soft_linear_forward.1} parent=1 // pred_check
      _
    $region3: #{_soft_linear_forward.1} parent=1 // pred_check_branch
      %12 = sbr.rel (0) target = $region5
    $region4: #{_soft_linear_forward.1} parent=1 // pred_region
      _
    $region5: #{_soft_linear_forward.1} parent=1 // pred_fallthru
      _
    // Predicated region
    $region6: #{_soft_linear_forward.1} parent=1 // pred_check
      _
    $region7: #{_soft_linear_forward.1} parent=1 // pred_check_branch
      %14 = sbr.rel (0) target = $region9
    $region8: #{_soft_linear_forward.1} parent=1 // pred_region
      _
    $region9: #{_soft_linear_forward.1} parent=1 // pred_fallthru
      _
    // Predicated region
    $region10: #{_soft_linear_forward.1} parent=1 // pred_check
      _
    $region11: #{_soft_linear_forward.1} parent=1 // pred_check_branch
      %16 = sbr.rel (0) target = $region13
    $region12: #{_soft_linear_forward.1} parent=1 // pred_region
      _
    $region13: #{_soft_linear_forward.1} parent=1 // pred_fallthru
      _
    // Predicated region
    $region14: #{_soft_linear_forward.1} parent=1 // pred_check
      _
    $region15: #{_soft_linear_forward.1} parent=1 // pred_check_branch
      %18 = sbr.rel (0) target = $region17
    $region16: #{_soft_linear_forward.1} parent=1 // pred_region
      _
    $region17: #{_soft_linear_forward.1} parent=1 // pred_fallthru
      _
    // Predicated region
    $region18: #{_soft_linear_forward.1} parent=1 // pred_check
      _
    $region19: #{_soft_linear_forward.1} parent=1 // pred_check_branch
      %20 = sbr.rel (0) target = $region21
    $region20: #{_soft_linear_forward.1} parent=1 // pred_region
      _
    $region21: #{_soft_linear_forward.1} parent=1 // pred_fallthru
      _
    %v21 = vld [vmem:[%s0] sm:$0xff]
    %v22 = vld [vmem:[%s0 + $0x8] sm:$0xff]
    %v23 = vld [vmem:[%s0 + $0x10] sm:$0xff]
    %v24 = vld [vmem:[%s0 + $0x18] sm:$0xff]
    %v25 = vld [vmem:[%s1] sm:$0xff]
    %v26 = vld [vmem:[%s1 + $0x8] sm:$0xff]
    %v27 = vld [vmem:[%s1 + $0x10] sm:$0xff]
    %v28 = vld [vmem:[%s1 + $0x18] sm:$0xff]
    %v29 = vld [vmem:[%s1 + $0x20] sm:$0xff]
    %v30 = vld [vmem:[%s1 + $0x28] sm:$0xff]
    %v31 = vld [vmem:[%s1 + $0x30] sm:$0xff]
    %v32 = vld [vmem:[%s1 + $0x38] sm:$0xff]
    %v33 = vld [vmem:[%s1 + $0x40] sm:$0xff]
    %v34 = vld [vmem:[%s1 + $0x48] sm:$0xff]
    %v35 = vld [vmem:[%s1 + $0x50] sm:$0xff]
    %v36 = vld [vmem:[%s1 + $0x58] sm:$0xff]
    %v37 = vld [vmem:[%s1 + $0x60] sm:$0xff]
    %v38 = vld [vmem:[%s1 + $0x68] sm:$0xff]
    %v39 = vld [vmem:[%s1 + $0x70] sm:$0xff]
    %v40 = vld [vmem:[%s1 + $0x78] sm:$0xff]
    %v41 = vld [vmem:[%s1 + $0x80] sm:$0xff]
    %v42 = vld [vmem:[%s1 + $0x88] sm:$0xff]
    %v43 = vld [vmem:[%s1 + $0x90] sm:$0xff]
    %v44 = vld [vmem:[%s1 + $0x98] sm:$0xff]
    %v45 = vld [vmem:[%s1 + $0xa0] sm:$0xff]
    %v46 = vld [vmem:[%s1 + $0xa8] sm:$0xff]
    %v47 = vld [vmem:[%s1 + $0xb0] sm:$0xff]
    %v48 = vld [vmem:[%s1 + $0xb8] sm:$0xff]
    %v49 = vld [vmem:[%s1 + $0xc0] sm:$0xff]
    %v50 = vld [vmem:[%s1 + $0xc8] sm:$0xff]
    %v51 = vld [vmem:[%s1 + $0xd0] sm:$0xff]
    %v52 = vld [vmem:[%s1 + $0xd8] sm:$0xff]
    %v53 = vld [vmem:[%s1 + $0xe0] sm:$0xff]
    %v54 = vld [vmem:[%s1 + $0xe8] sm:$0xff]
    %v55 = vld [vmem:[%s1 + $0xf0] sm:$0xff]
    %v56 = vld [vmem:[%s1 + $0xf8] sm:$0xff]
    %v57 = vld [vmem:[%s3] sm:$0xff]
    %v58 = vld [vmem:[%s3 + $0x8] sm:$0xff]
    %v59 = vld [vmem:[%s4] sm:$0xff]
    %vm60 = vcmask 64512
    %v62 = vsel %vm60, %v57, 0
    %v65 = vsel %vm60, %v58, 0
    %67 = vmatprep.subr.mxu0 0.0
    %68 = vmatpush1.msra.mxu0 %v59
    %69 = vmatprep.subr.mxu0 0.0
    %70 = vmatpush1.msra.mxu0 0.0
    %71 = vmatprep.subr.mxu0 0.0
    %72 = vmatpush1.msra.mxu0 0.0
    %73 = vmatprep.subr.mxu0 0.0
    %74 = vmatpush1.msra.mxu0 0.0
    %75 = vmatprep.subr.mxu0 0.0
    %76 = vmatpush1.msra.mxu0 0.0
    %77 = vmatprep.subr.mxu0 0.0
    %78 = vmatpush1.msra.mxu0 0.0
    %79 = vmatprep.subr.mxu0 0.0
    %80 = vmatpush1.msra.mxu0 0.0
    %81 = vmatprep.subr.mxu0 0.0
    %82 = vmatpush1.msra.mxu0 0.0
    %83 = vmatprep.subr.mxu0 0.0
    %84 = vmatpush1.msra.mxu0 0.0
    %85 = vmatprep.subr.mxu0 0.0
    %86 = vmatpush1.msra.mxu0 0.0
    %87 = vmatprep.subr.mxu0 0.0
    %88 = vmatpush1.msra.mxu0 0.0
    %89 = vmatprep.subr.mxu0 0.0
    %90 = vmatpush1.msra.mxu0 0.0
    %91 = vmatprep.subr.mxu0 0.0
    %92 = vmatpush1.msra.mxu0 0.0
    %93 = vmatprep.subr.mxu0 0.0
    %94 = vmatpush1.msra.mxu0 0.0
    %95 = vmatprep.subr.mxu0 0.0
    %96 = vmatpush1.msra.mxu0 0.0
    %97 = vmatprep.subr.mxu0 0.0
    %98 = vmatpush1.msra.mxu0 0.0
    %99 = vmatprep.subr.mxu0 0.0
    %100 = vmatpush1.msra.mxu0 0.0
    %101 = vmatprep.subr.mxu0 0.0
    %102 = vmatpush1.msra.mxu0 0.0
    %103 = vmatprep.subr.mxu0 0.0
    %104 = vmatpush1.msra.mxu0 0.0
    %105 = vmatprep.subr.mxu0 0.0
    %106 = vmatpush1.msra.mxu0 0.0
    %107 = vmatprep.subr.mxu0 0.0
    %108 = vmatpush1.msra.mxu0 0.0
    %109 = vmatprep.subr.mxu0 0.0
    %110 = vmatpush1.msra.mxu0 0.0
    %111 = vmatprep.subr.mxu0 0.0
    %112 = vmatpush1.msra.mxu0 0.0
    %113 = vmatprep.subr.mxu0 0.0
    %114 = vmatpush1.msra.mxu0 0.0
    %115 = vmatprep.subr.mxu0 0.0
    %116 = vmatpush1.msra.mxu0 0.0
    %117 = vmatprep.subr.mxu0 0.0
    %118 = vmatpush1.msra.mxu0 0.0
    %119 = vmatprep.subr.mxu0 0.0
    %120 = vmatpush1.msra.mxu0 0.0
    %121 = vmatprep.subr.mxu0 0.0
    %122 = vmatpush1.msra.mxu0 0.0
    %123 = vmatprep.subr.mxu0 0.0
    %124 = vmatpush1.msra.mxu0 0.0
    %125 = vmatprep.subr.mxu0 0.0
    %126 = vmatpush1.msra.mxu0 0.0
    %127 = vmatprep.subr.mxu0 0.0
    %128 = vmatpush1.msra.mxu0 0.0
    %129 = vmatprep.subr.mxu0 0.0
    %130 = vmatpush1.msra.mxu0 0.0
    %131 = vmatprep.mubr.f32.mxu0 0.0
    %132 = vmatmul.mubr.f32.gmra.mrb[0].mxu0 %v62
    %v133 = vpop.f32.mrb[0].mxu0
    %v134 = vadd.f32 0.0, %v133
    %v135 = vpop.f32.mrb[0].mxu0
    %136 = vmatprep.mubr.f32.mxu0 0.0
    %137 = vmatmul.mubr.f32.gmra.mrb[0].mxu0 %v65
    %v138 = vpop.f32.mrb[0].mxu0
    %v139 = vadd.f32 0.0, %v138
    %v140 = vpop.f32.mrb[0].mxu0
    %141 = vdwg.mxu0
    %142 = vmatprep.subr.mxu0 %v26
    %143 = vmatpush1.xpose.msra.mxu0 %v25
    %144 = vmatprep.subr.mxu0 %v28
    %145 = vmatpush1.xpose.msra.mxu0 %v27
    %146 = vmatprep.subr.mxu0 %v30
    %147 = vmatpush1.xpose.msra.mxu0 %v29
    %148 = vmatprep.subr.mxu0 %v32
    %149 = vmatpush1.xpose.msra.mxu0 %v31
    %150 = vmatprep.subr.mxu0 %v34
    %151 = vmatpush1.xpose.msra.mxu0 %v33
    %152 = vmatprep.subr.mxu0 %v36
    %153 = vmatpush1.xpose.msra.mxu0 %v35
    %154 = vmatprep.subr.mxu0 %v38
    %155 = vmatpush1.xpose.msra.mxu0 %v37
    %156 = vmatprep.subr.mxu0 %v40
    %157 = vmatpush1.xpose.msra.mxu0 %v39
    %158 = vmatprep.subr.mxu0 %v42
    %159 = vmatpush1.xpose.msra.mxu0 %v41
    %160 = vmatprep.subr.mxu0 %v44
    %161 = vmatpush1.xpose.msra.mxu0 %v43
    %162 = vmatprep.subr.mxu0 %v46
    %163 = vmatpush1.xpose.msra.mxu0 %v45
    %164 = vmatprep.subr.mxu0 %v48
    %165 = vmatpush1.xpose.msra.mxu0 %v47
    %166 = vmatprep.subr.mxu0 %v50
    %167 = vmatpush1.xpose.msra.mxu0 %v49
    %168 = vmatprep.subr.mxu0 %v52
    %169 = vmatpush1.xpose.msra.mxu0 %v51
    %170 = vmatprep.subr.mxu0 %v54
    %171 = vmatpush1.xpose.msra.mxu0 %v53
    %172 = vmatprep.subr.mxu0 %v56
    %173 = vmatpush1.xpose.msra.mxu0 %v55
    %174 = vmatprep.subr.mxu0 0.0
    %175 = vmatpush1.xpose.msra.mxu0 0.0
    %176 = vmatprep.subr.mxu0 0.0
    %177 = vmatpush1.xpose.msra.mxu0 0.0
    %178 = vmatprep.subr.mxu0 0.0
    %179 = vmatpush1.xpose.msra.mxu0 0.0
    %180 = vmatprep.subr.mxu0 0.0
    %181 = vmatpush1.xpose.msra.mxu0 0.0
    %182 = vmatprep.subr.mxu0 0.0
    %183 = vmatpush1.xpose.msra.mxu0 0.0
    %184 = vmatprep.subr.mxu0 0.0
    %185 = vmatpush1.xpose.msra.mxu0 0.0
    %186 = vmatprep.subr.mxu0 0.0
    %187 = vmatpush1.xpose.msra.mxu0 0.0
    %188 = vmatprep.subr.mxu0 0.0
    %189 = vmatpush1.xpose.msra.mxu0 0.0
    %190 = vmatprep.subr.mxu0 0.0
    %191 = vmatpush1.xpose.msra.mxu0 0.0
    %192 = vmatprep.subr.mxu0 0.0
    %193 = vmatpush1.xpose.msra.mxu0 0.0
    %194 = vmatprep.subr.mxu0 0.0
    %195 = vmatpush1.xpose.msra.mxu0 0.0
    %196 = vmatprep.subr.mxu0 0.0
    %197 = vmatpush1.xpose.msra.mxu0 0.0
    %198 = vmatprep.subr.mxu0 0.0
    %199 = vmatpush1.xpose.msra.mxu0 0.0
    %200 = vmatprep.subr.mxu0 0.0
    %201 = vmatpush1.xpose.msra.mxu0 0.0
    %202 = vmatprep.subr.mxu0 0.0
    %203 = vmatpush1.xpose.msra.mxu0 0.0
    %204 = vmatprep.subr.mxu0 0.0
    %205 = vmatpush1.xpose.msra.mxu0 0.0
    %206 = vmatprep.mubr.f32.mxu0 %v22
    %207 = vmatmul.mubr.f32.gmra.mrb[0].mxu0 %v21
    %v208 = vpop.f32.mrb[0].mxu0
    %v209 = vadd.f32 %v134, %v208
    %v210 = vpop.f32.mrb[0].mxu0
    %211 = vmatprep.mubr.f32.mxu0 %v24
    %212 = vmatmul.mubr.f32.gmra.mrb[0].mxu0 %v23
    %v213 = vpop.f32.mrb[0].mxu0
    %v214 = vadd.f32 %v139, %v213
    %v215 = vpop.f32.mrb[0].mxu0
    %216 = vdwg.mxu0
    %v217 = vld [vmem:[%s2] sm:$0x1]
    %v219 = vlaneseq
    %v220 = vshrl.u32 %v219, 7
    %v221 = vsub.s32 0, %v220
    %v222 = vrot.slane %v217, %v221
    %v224 = vadd.f32 %v209, %v222
    %v225 = vadd.f32 %v214, %v222
    %226 = vst [vmem:[#allocation2] sm:$0xff] %v224
    %227 = vst [vmem:[#allocation2 + $0x8] sm:$0xff] %v225
    // Predicated region
    $region22: #{_soft_linear_forward.1} parent=1 // pred_check
      _
    $region23: #{_soft_linear_forward.1} parent=1 // pred_check_branch
      %229 = sbr.rel (0) target = $region25
    $region24: #{_soft_linear_forward.1} parent=1 // pred_region
      %s231 = ssub.s32 256, 256
      %232 = vsyncadd [#allocation3], %s231
      %s233 = sshll.u32 [#allocation2], 4
      %s234 = int_to_ptr.vmem [resolvable:$true] %s233
      %239 = dma.vmem_to_hbm [thread:$0]  %s234, 256, %s5, [#allocation3], 128, 128, 8
    $region25: #{_soft_linear_forward.1} parent=1 // pred_fallthru
      _
    // Predicated region
    $region26: #{_soft_linear_forward.1} parent=1 // pred_check
      _
    $region27: #{_soft_linear_forward.1} parent=1 // pred_check_branch
      %241 = sbr.rel (0) target = $region29
    $region28: #{_soft_linear_forward.1} parent=1 // pred_region
      %242 = dma.done [#allocation3], 256
    $region29: #{_soft_linear_forward.1} parent=1 // pred_fallthru
      _
    %243 = vsyncpa [#allocation3], 1

</llo_original>
